<compile_context>
chip_gen: v5e
topology: v5e:2x2
jax: 0.10.0
libtpu: 0.0.40
codegen_flags: <defaults>
</compile_context>

<pallas_src>
import jax
import jax.numpy as jnp
from jax.experimental import pallas as pl
from jax.experimental.pallas import tpu as pltpu


def _affine_kernel(bias_ref, x_ref, o_ref):
    # bias_ref: (1,) f32 scalar in SMEM; x_ref / o_ref: [TR, L] tiles in VMEM.
    b = bias_ref[0].astype(o_ref.dtype)       # cast scalar once; add stays native dtype
    o_ref[...] = x_ref[...] + b


def _round_down(a, b):
    return (a // b) * b


def _round_up(a, b):
    return ((a + b - 1) // b) * b


def _pick_lane_width(total, max_l=2048):
    """Largest multiple-of-128 divisor of `total`, capped at max_l. None if no such divisor."""
    start = min(max_l, _round_down(total, 128))
    for l in range(start, 0, -128):
        if total % l == 0:
            return l
    return None


def affine_forward(x, bias, *, target_block_bytes=8 << 20,
                   vmem_limit_bytes=48 << 20, donate_input=False):
    """x: any-shape array (module uses NCHW); bias: shape-(1,) scalar. Returns x + bias."""
    orig_shape = x.shape
    total = x.size
    if total == 0:                             # zero-size guard
        return x

    dtype = x.dtype
    itemsize = jnp.dtype(dtype).itemsize
    # Packed-sublane multiple: f32 -> 8, bf16/f16 -> 16, int8/fp8 -> 32.
    sub_mult = max(8, 32 // itemsize)

    bias_s = jnp.asarray(bias).reshape(-1).astype(jnp.float32)   # 32-bit scalar for SMEM

    # ---- lane-dense 2-D view [rows, L]; avoid any padding copy whenever possible ----
    L = _pick_lane_width(total)
    if L is not None:
        rows = total // L
        x2d = x.reshape(rows, L)               # free reshape of a contiguous array
        pad = 0
    else:
        # Rare ragged case (x.size % 128 != 0): one padded copy. The alternatives
        # (tail kernel + concat, or a 1-D layout) cost at least as much extra HBM
        # traffic / vreg efficiency, so keep the simple fallback here.
        L = 512
        rows = pl.cdiv(total, L)
        padded_total = rows * L
        pad = padded_total - total
        x2d = jnp.pad(x.reshape(-1), (0, pad)).reshape(rows, L)

    # ---- row tile: byte-budgeted, packed-sublane aligned, >= 4 grid steps when possible
    row_bytes = L * itemsize
    tr = max(sub_mult, _round_down(max(1, target_block_bytes // row_bytes), sub_mult))
    if rows >= 4 * sub_mult:
        # >= 4 grid steps (>= 2 per TensorCore on 2-core chips) so the double-buffered
        # pipeline overlaps inbound DMA, compute, and outbound writeback.
        tr = min(tr, max(sub_mult, _round_down(rows // 4, sub_mult)))
    if tr >= rows:
        tr = rows                              # single full-extent block (legal: == full dim)

    grid = pl.cdiv(rows, tr)                   # ragged last block is masked by Pallas

    out2d = pl.pallas_call(
        _affine_kernel,
        out_shape=jax.ShapeDtypeStruct((rows, L), dtype),
        grid_spec=pltpu.PrefetchScalarGridSpec(
            num_scalar_prefetch=0,
            grid=(grid,),
            in_specs=[
                pl.BlockSpec(memory_space=pltpu.SMEM),       # scalar bias
                pl.BlockSpec((tr, L), lambda i: (i, 0)),     # x tile
            ],
            out_specs=pl.BlockSpec((tr, L), lambda i: (i, 0)),
        ),
        compiler_params=pltpu.CompilerParams(
            dimension_semantics=("parallel",),
            vmem_limit_bytes=vmem_limit_bytes,               # explicit: covers 2x(in+out) blocks
        ),
        input_output_aliases=({1: 0} if donate_input else {}),
    )(bias_s, x2d)

    if pad:
        return out2d.reshape(-1)[:total].reshape(orig_shape)
    return out2d.reshape(orig_shape)


if __name__ == "__main__":
    key = jax.random.PRNGKey(0)

    # Deterministic parameter init, matching nn.Parameter(torch.ones(1)) / zeros(1).
    weight = jnp.ones((1,), dtype=jnp.float32)   # unused in forward (kept for parity)
    bias = jnp.zeros((1,), dtype=jnp.float32)

    # Small NCHW input consistent with the module's generic forward.
    x = jax.random.normal(key, (2, 4, 16, 16), dtype=jnp.float32)

    # Module-default bias (= 0).
    out = affine_forward(x, bias)
    out = jax.block_until_ready(out)
    ref = x + bias[0]
    assert out.shape == x.shape and out.dtype == x.dtype
    assert jnp.allclose(out, ref, atol=0.0, rtol=0.0)

    # Non-zero bias to actually exercise the add.
    bias2 = jnp.full((1,), 0.5, dtype=jnp.float32)
    out2 = jax.block_until_ready(affine_forward(x, bias2))
    ref2 = x + bias2[0]
    assert jnp.allclose(out2, ref2, atol=0.0, rtol=0.0)

    print("KERNEL_OK")
</pallas_src>

<mosaic_0001>
module attributes {stable_mosaic.version = 11 : i64} {
  func.func @_affine_kernel(%arg0: i32, %arg1: memref<1xf32, #tpu.memory_space<smem>>, %arg2: memref<1x2048xf32, #tpu.memory_space<vmem>>, %arg3: memref<1x2048xf32, #tpu.memory_space<vmem>>) attributes {dimension_semantics = [#tpu.dimension_semantics<parallel>], iteration_bounds = array<i64: 1>, scalar_prefetch = 0 : i64, scratch_operands = 0 : i64, tpu.core_type = #tpu.core_type<tc>, window_params = [{transform_indices = @transform_0, window_bounds = array<i64: 1>}, {transform_indices = @transform_1, window_bounds = array<i64: 1, 2048>}, {transform_indices = @transform_2, window_bounds = array<i64: 1, 2048>}]} {
    %c0 = arith.constant 0 : index
    %0 = memref.load %arg1[%c0] : memref<1xf32, #tpu.memory_space<smem>>
    %c0_0 = arith.constant 0 : index
    %c0_1 = arith.constant 0 : index
    %1 = vector.load %arg2[%c0_0, %c0_1] : memref<1x2048xf32, #tpu.memory_space<vmem>>, vector<1x2048xf32>
    %2 = vector.broadcast %0 : f32 to vector<1x2048xf32>
    %3 = arith.addf %1, %2 : vector<1x2048xf32>
    %c0_2 = arith.constant 0 : index
    %c0_3 = arith.constant 0 : index
    %4 = vector.load %arg3[%c0_2, %c0_3] : memref<1x2048xf32, #tpu.memory_space<vmem>>, vector<1x2048xf32>
    tpu.vector_store %arg3[%c0_2, %c0_3], %3 {strides = array<i32>} : memref<1x2048xf32, #tpu.memory_space<vmem>>, vector<1x2048xf32>,
    return
  }
  func.func @transform_0(%arg0: i32) -> i32 {
    %c0_i32 = arith.constant 0 : i32
    %c0_i32_0 = arith.constant 0 : i32
    return %c0_i32 : i32
  }
  func.func @transform_1(%arg0: i32) -> (i32, i32) {
    %c0_i32 = arith.constant 0 : i32
    %c0_i32_0 = arith.constant 0 : i32
    return %arg0, %c0_i32 : i32, i32
  }
  func.func @transform_2(%arg0: i32) -> (i32, i32) {
    %c0_i32 = arith.constant 0 : i32
    %c0_i32_0 = arith.constant 0 : i32
    return %arg0, %c0_i32 : i32, i32
  }
}

</mosaic_0001>

<llo_original>
// kernel: tpu_custom_call.1
$region0: #{tpu_custom_call.1}
  #allocation0 [shape = 'u32[]', space=smem, size = 0x4, offset = 0x4, fixed_abs, tag = 'smem constant byte address 0x4 - core index']
  #allocation1 [shape = 'u32[72,128]{1,0:T(1,128)}', space=vmem, size = 0x9000, scoped, tag = 'internal scratch']
  #allocation2 [shape = 'f32[1]{0:T(128)S(6)}', space=smem, size = 0x200, scoped, tag = 'scoped memory for tpu_custom_call.1']
  %s0 = inlined_call_operand.<no memory space> [shape: f32[1], index: 0, kind: input, shape index: {}]
  %s1 = inlined_call_operand.hbm [shape: f32[1,2048], index: 1, kind: input, shape index: {}]
  %s2 = inlined_call_operand.hbm [shape: f32[1,2048], index: 2, kind: output, shape index: {}]
  %s3 = sld [smem:[#allocation0]]
  $region22: #{tpu_custom_call.1} parent=0
    _
  %s5 = ssub.s32 1, %s3
  %s6 = scalar_select 0, %s5, %s3
  %7 = sst [smem:[#allocation2]] %s0
  $region1: #{tpu_custom_call.1} parent=0
    #allocation3 [shape = 'u8[8192]{0}', space=vmem, size = 0x2000, scoped, tag = 'input window, operand 1, single buffered']
    #allocation4 [shape = 's32[1]{0}', space=sflag, size = 0x4, scoped, tag = 'scoped memory for tpu_custom_call.1']
    #allocation5 [shape = 's32[1]{0}', space=sflag, size = 0x4, scoped, tag = 'scoped memory for tpu_custom_call.1']
    #allocation6 [shape = 'u8[8192]{0}', space=vmem, size = 0x2000, scoped, tag = 'output window, operand 0, single buffered']
    %8 = vsyncpa [#allocation4], 0
    %9 = vsyncpa [#allocation5], 0
    // Predicated region
    $region2: #{tpu_custom_call.1} parent=1 // pred_check
      _
    $region3: #{tpu_custom_call.1} parent=1 // pred_check_branch
      %11 = sbr.rel (0) target = $region5
    $region4: #{tpu_custom_call.1} parent=1 // pred_region
      _
    $region5: #{tpu_custom_call.1} parent=1 // pred_fallthru
      _
    // Predicated region
    $region6: #{tpu_custom_call.1} parent=1 // pred_check
      _
    $region7: #{tpu_custom_call.1} parent=1 // pred_check_branch
      %13 = sbr.rel (0) target = $region9
    $region8: #{tpu_custom_call.1} parent=1 // pred_region
      %15 = vsyncadd [#allocation4], 0
      %s17 = sshll.u32 %s1, 4
      %s18 = int_to_ptr.hbm [resolvable:$true] %s17
      %s19 = sshll.u32 [#allocation3], 4
      %s20 = int_to_ptr.vmem [resolvable:$true] %s19
      %22 = dma.hbm_to_vmem [thread:$0]  %s18, 256, %s20, [#allocation4]
    $region9: #{tpu_custom_call.1} parent=1 // pred_fallthru
      _
    // Predicated region
    $region10: #{tpu_custom_call.1} parent=1 // pred_check
      _
    $region11: #{tpu_custom_call.1} parent=1 // pred_check_branch
      %24 = sbr.rel (0) target = $region13
    $region12: #{tpu_custom_call.1} parent=1 // pred_region
      %26 = dma.done [#allocation4], 256
    $region13: #{tpu_custom_call.1} parent=1 // pred_fallthru
      _
    %s27 = sld [smem:[#allocation2]]
    %v28 = vld [vmem:[#allocation3] sm:$0xff]
    %v29 = vld [vmem:[#allocation3 + $0x8] sm:$0xff]
    %v30 = vstv %s27
    %v31 = vadd.f32 %v28, %v30
    %v32 = vadd.f32 %v29, %v30
    %33 = vst [vmem:[#allocation6] sm:$0xff] %v31
    %34 = vst [vmem:[#allocation6 + $0x8] sm:$0xff] %v32
    // Predicated region
    $region14: #{tpu_custom_call.1} parent=1 // pred_check
      _
    $region15: #{tpu_custom_call.1} parent=1 // pred_check_branch
      %36 = sbr.rel (0) target = $region17
    $region16: #{tpu_custom_call.1} parent=1 // pred_region
      %38 = vsyncadd [#allocation5], 0
      %s40 = sshll.u32 [#allocation6], 4
      %s41 = int_to_ptr.vmem [resolvable:$true] %s40
      %s42 = sshll.u32 %s2, 4
      %s43 = int_to_ptr.hbm [resolvable:$true] %s42
      %45 = dma.vmem_to_hbm [thread:$0]  %s41, 256, %s43, [#allocation5]
    $region17: #{tpu_custom_call.1} parent=1 // pred_fallthru
      _
    // Predicated region
    $region18: #{tpu_custom_call.1} parent=1 // pred_check
      _
    $region19: #{tpu_custom_call.1} parent=1 // pred_check_branch
      %47 = sbr.rel (0) target = $region21
    $region20: #{tpu_custom_call.1} parent=1 // pred_region
      %49 = dma.done [#allocation5], 256
    $region21: #{tpu_custom_call.1} parent=1 // pred_fallthru
      _
    %50 = vsyncpa [#allocation4], 1
    %51 = vsyncpa [#allocation5], 1

</llo_original>
